<compile_context>
chip_gen: v7x
topology: tpu7x:2x2x1
jax: 0.10.0
libtpu: 0.0.40
codegen_flags: <defaults>
</compile_context>

<pallas_src>
import math
import jax
import jax.numpy as jnp
from jax.experimental import pallas as pl
from jax.experimental.pallas import tpu as pltpu

# ---- model config (small, consistent with ModelArgs conventions) ----
B, S, D = 2, 8, 32          # batch, seq, dim
N_HEADS = 4
HEAD_DIM = D // N_HEADS     # 8
HALF = HEAD_DIM // 2        # 4
MULTIPLE_OF = 32
NORM_EPS = 1e-5
# FeedForward hidden sizing exactly as in the module:
_hd = int(2 * (4 * D) / 3)
HIDDEN = MULTIPLE_OF * ((_hd + MULTIPLE_OF - 1) // MULTIPLE_OF)   # 96
HIDDEN_PAD = 128            # zero-padded to lane width; padding is exact (adds 0)
BS = B * S
QKV_COLS = (4 + N_HEADS) * D   # [q, q_rot, k, k_rot, Wvo_0..Wvo_3] -> 256


def transformer_block_kernel(x_ref, cossin_ref, mask_ref,
                             wqkv_ref, w13_ref, w2_ref, out_ref):
    x = x_ref[...]                       # (BS, D) f32
    cs = cossin_ref[...]                 # (2*BS, D): [cos ; sin]
    cos_f = cs[:BS]
    sin_f = cs[BS:]
    mask = mask_ref[...]                 # (BS, BS) combined causal+batch mask

    # ---------------- attention ----------------
    # RMSNorm (weight already folded into the QKV weight rows)
    xn = x * jax.lax.rsqrt(jnp.mean(x * x, axis=-1, keepdims=True) + NORM_EPS)

    # one fused matmul: [q, rot(q), k, rot(k), per-head (v @ wo_h)] -- N = 256
    qkv = jnp.dot(xn.astype(jnp.bfloat16), wqkv_ref[...],
                  preferred_element_type=jnp.float32)            # (BS, 8D)
    q_raw = qkv[:, :D]
    q_rot = qkv[:, D:2 * D]
    k_raw = qkv[:, 2 * D:3 * D]
    k_rot = qkv[:, 3 * D:4 * D]

    # RoPE: rotate_half sign/permutation + 1/sqrt(head_dim) folded into weights
    q = (q_raw * cos_f + q_rot * sin_f).astype(jnp.bfloat16)     # (BS, D)
    k = (k_raw * cos_f + k_rot * sin_f).astype(jnp.bfloat16)

    attn = jnp.zeros((BS, D), jnp.float32)
    for h in range(N_HEADS):
        sl = slice(h * HEAD_DIM, (h + 1) * HEAD_DIM)
        q_h = q[:, sl]                                            # (BS, Dh)
        k_h = k[:, sl]
        # scores_h = q_h @ k_h.T (contraction expressed directly, no transpose)
        s_h = jax.lax.dot_general(
            q_h, k_h, (((1,), (1,)), ((), ())),
            preferred_element_type=jnp.float32) + mask            # (BS, BS)
        s_h = s_h - jnp.max(s_h, axis=-1, keepdims=True)
        p_h = jnp.exp(s_h)
        p_h = p_h * pl.reciprocal(jnp.sum(p_h, axis=-1, keepdims=True),
                                  approx=True)
        # value + output projection fused at prep: v'_h = xn @ (Wv_h @ Wo_h)
        vprime_h = qkv[:, (4 + h) * D:(5 + h) * D].astype(jnp.bfloat16)
        attn = attn + jnp.dot(p_h.astype(jnp.bfloat16), vprime_h,
                              preferred_element_type=jnp.float32)  # (BS, D)

    h1 = x + attn

    # ---------------- feed forward (SwiGLU) ----------------
    # RMSNorm weight folded into w13 rows
    hn = h1 * jax.lax.rsqrt(jnp.mean(h1 * h1, axis=-1, keepdims=True) + NORM_EPS)
    gu = jnp.dot(hn.astype(jnp.bfloat16), w13_ref[...],
                 preferred_element_type=jnp.float32)              # (BS, 256)
    g = gu[:, :HIDDEN_PAD]
    u = gu[:, HIDDEN_PAD:]
    act = g * jax.nn.sigmoid(g) * u                               # SiLU(g) * u
    ff = jnp.dot(act.astype(jnp.bfloat16), w2_ref[...],
                 preferred_element_type=jnp.float32)

    # TODO(synk): output last-dim is 32 lanes (<128) -> masked store; a
    # lane-dense repack only pays off once BS*D grows past a few tiles.
    out_ref[...] = h1 + ff


def prepare_block_params(params, cos, sin, mask):
    """One-time weight fusion / folding / padding. Run ONCE outside the hot path."""
    (wq, wk, wv, wo, w1, w2, w3, attn_nw, ffn_nw) = params
    scale = 1.0 / math.sqrt(HEAD_DIM)

    # signed per-head rotate_half permutation: (t @ P) == rotate_half(t)
    eye = jnp.eye(HALF, dtype=jnp.float32)
    zer = jnp.zeros((HALF, HALF), jnp.float32)
    ph = jnp.block([[zer, eye], [-eye, zer]])                     # (Dh, Dh)
    P = jnp.kron(jnp.eye(N_HEADS, dtype=jnp.float32), ph)         # (D, D)

    a_w = attn_nw.reshape(D, 1)   # attention RMSNorm weight -> scale weight rows
    f_w = ffn_nw.reshape(D, 1)    # ffn RMSNorm weight

    wq_s = (a_w * wq) * scale     # 1/sqrt(head_dim) folded into q projection
    wk_s = a_w * wk
    wv_s = a_w * wv
    # per-head fused value+output projection: Wvo_h = Wv[:, h] @ Wo[h, :]
    wvo = [wv_s[:, h * HEAD_DIM:(h + 1) * HEAD_DIM]
           @ wo[h * HEAD_DIM:(h + 1) * HEAD_DIM, :] for h in range(N_HEADS)]
    wqkv = jnp.concatenate([wq_s, wq_s @ P, wk_s, wk_s @ P] + wvo,
                           axis=1).astype(jnp.bfloat16)           # (D, 8D)

    # FFN: norm weight folded into w1/w3 rows; hidden 96 zero-padded to 128 (exact)
    w1p = jnp.zeros((D, HIDDEN_PAD), jnp.float32).at[:, :HIDDEN].set(f_w * w1)
    w3p = jnp.zeros((D, HIDDEN_PAD), jnp.float32).at[:, :HIDDEN].set(f_w * w3)
    w13 = jnp.concatenate([w1p, w3p], axis=1).astype(jnp.bfloat16)  # (D, 256)
    w2p = (jnp.zeros((HIDDEN_PAD, D), jnp.float32)
           .at[:HIDDEN, :].set(w2).astype(jnp.bfloat16))            # (128, D)

    # RoPE tables tiled to (BS, D), packed [cos ; sin] along sublanes (one DMA)
    cos_f = jnp.tile(cos, (B, N_HEADS))
    sin_f = jnp.tile(sin, (B, N_HEADS))
    cossin = jnp.concatenate([cos_f, sin_f], axis=0)              # (2*BS, D)

    # combined (BS, BS) additive mask: provided causal mask within a batch,
    # -inf across batches (so one flat softmax over BS columns is exact)
    row_b = (jnp.arange(BS) // S)[:, None]
    col_b = (jnp.arange(BS) // S)[None, :]
    mask_full = jnp.where(row_b == col_b, jnp.tile(mask, (B, B)),
                          -1e9).astype(jnp.float32)

    return (jax.block_until_ready(cossin), mask_full, wqkv, w13, w2p)


def transformer_block(x, prepped):
    cossin, mask_full, wqkv, w13, w2p = prepped
    x_flat = x.reshape(BS, D)

    def full(shape):
        return pl.BlockSpec(shape, lambda i: (0,) * len(shape))

    # Single grid step: whole (tiny) problem resident in VMEM at once; no
    # per-step pipeline overhead.  (At production sizes on v7x, reintroduce a
    # "parallel" batch/head grid axis so both TensorCores are used, and tile
    # weights against the 64 MiB VMEM.)
    out_flat = pl.pallas_call(
        transformer_block_kernel,
        out_shape=jax.ShapeDtypeStruct((BS, D), jnp.float32),
        grid=(1,),
        in_specs=[
            full((BS, D)),                      # x
            full((2 * BS, D)),                  # [cos ; sin]
            full((BS, BS)),                     # combined additive mask
            full((D, QKV_COLS)),                # fused q | rot(q) | k | rot(k) | Wvo_h
            full((D, 2 * HIDDEN_PAD)),          # w1|w3 fused (padded)
            full((HIDDEN_PAD, D)),              # w2 (padded)
        ],
        out_specs=full((BS, D)),
        compiler_params=pltpu.CompilerParams(
            dimension_semantics=("arbitrary",)),
    )(x_flat, cossin, mask_full, wqkv, w13, w2p)
    return out_flat.reshape(B, S, D)


# ---------------- pure-JAX f32 reference for verification ----------------
def reference(x, cos, sin, mask, params):
    (wq, wk, wv, wo, w1, w2, w3, attn_nw, ffn_nw) = params

    def rms(t, w):
        return t * jax.lax.rsqrt(jnp.mean(t * t, -1, keepdims=True) + NORM_EPS) * w

    def rot_half(t):
        h = t.shape[-1] // 2
        return jnp.concatenate([-t[..., h:], t[..., :h]], -1)

    xn = rms(x, attn_nw)
    q = (xn @ wq).reshape(B, S, N_HEADS, HEAD_DIM)
    k = (xn @ wk).reshape(B, S, N_HEADS, HEAD_DIM)
    v = (xn @ wv).reshape(B, S, N_HEADS, HEAD_DIM)
    c = cos[None, :, None, :]
    s = sin[None, :, None, :]
    q = q * c + rot_half(q) * s
    k = k * c + rot_half(k) * s
    q = q.transpose(0, 2, 1, 3)
    k = k.transpose(0, 2, 1, 3)
    v = v.transpose(0, 2, 1, 3)
    scores = q @ k.transpose(0, 1, 3, 2) / math.sqrt(HEAD_DIM) + mask[None, None]
    p = jax.nn.softmax(scores, -1)
    o = (p @ v).transpose(0, 2, 1, 3).reshape(B, S, D)
    h1 = x + o @ wo
    hn = rms(h1, ffn_nw)
    ff = (jax.nn.silu(hn @ w1) * (hn @ w3)) @ w2
    return h1 + ff


if __name__ == "__main__":
    key = jax.random.PRNGKey(0)
    ks = jax.random.split(key, 12)

    x = jax.random.normal(ks[0], (B, S, D), jnp.float32)

    scale = 0.05
    wq = scale * jax.random.normal(ks[1], (D, D), jnp.float32)
    wk = scale * jax.random.normal(ks[2], (D, D), jnp.float32)
    wv = scale * jax.random.normal(ks[3], (D, D), jnp.float32)
    wo = scale * jax.random.normal(ks[4], (D, D), jnp.float32)
    w1 = scale * jax.random.normal(ks[5], (D, HIDDEN), jnp.float32)
    w2 = scale * jax.random.normal(ks[6], (HIDDEN, D), jnp.float32)
    w3 = scale * jax.random.normal(ks[7], (D, HIDDEN), jnp.float32)
    # non-trivial RMSNorm weights so the weight-folding is actually exercised
    attn_nw = 1.0 + 0.1 * jax.random.normal(ks[8], (1, D), jnp.float32)
    ffn_nw = 1.0 + 0.1 * jax.random.normal(ks[9], (1, D), jnp.float32)
    params = (wq, wk, wv, wo, w1, w2, w3, attn_nw, ffn_nw)

    # RoPE cos/sin tables (rotate_half convention: freqs repeated twice)
    inv_freq = 1.0 / (10000.0 ** (jnp.arange(0, HEAD_DIM, 2, dtype=jnp.float32) / HEAD_DIM))
    t = jnp.arange(S, dtype=jnp.float32)
    ang = jnp.outer(t, inv_freq)                         # (S, HEAD_DIM//2)
    emb = jnp.concatenate([ang, ang], axis=-1)           # (S, HEAD_DIM)
    cos = jnp.cos(emb)
    sin = jnp.sin(emb)

    # causal additive mask
    i = jnp.arange(S)[:, None]
    j = jnp.arange(S)[None, :]
    mask = jnp.where(j > i, -1e9, 0.0).astype(jnp.float32)

    # one-time prep (fused/padded bf16 weights, tiled tables, combined mask)
    prepped = prepare_block_params(params, cos, sin, mask)

    out = transformer_block(x, prepped)
    out = jax.block_until_ready(out)

    ref = reference(x, cos, sin, mask, params)
    assert out.shape == (B, S, D)
    # bf16 matmul operands (f32 accumulation) + approx reciprocal -> loosened tol
    assert jnp.allclose(out, ref, atol=3e-2, rtol=3e-2), (
        f"max abs diff {jnp.max(jnp.abs(out - ref))}")

    print("KERNEL_OK")
</pallas_src>

<mosaic_0001>
module attributes {stable_mosaic.version = 11 : i64} {
  func.func @transformer_block_kernel(%arg0: i32, %arg1: memref<16x32xf32, #tpu.memory_space<vmem>>, %arg2: memref<32x32xf32, #tpu.memory_space<vmem>>, %arg3: memref<16x16xf32, #tpu.memory_space<vmem>>, %arg4: memref<32x256xbf16, #tpu.memory_space<vmem>>, %arg5: memref<32x256xbf16, #tpu.memory_space<vmem>>, %arg6: memref<128x32xbf16, #tpu.memory_space<vmem>>, %arg7: memref<16x32xf32, #tpu.memory_space<vmem>>) attributes {dimension_semantics = [#tpu.dimension_semantics<arbitrary>], iteration_bounds = array<i64: 1>, scalar_prefetch = 0 : i64, scratch_operands = 0 : i64, tpu.core_type = #tpu.core_type<tc>, window_params = [{pipeline_mode = #tpu.pipeline_mode<synchronous>, transform_indices = @transform_0, window_bounds = array<i64: 16, 32>}, {pipeline_mode = #tpu.pipeline_mode<synchronous>, transform_indices = @transform_1, window_bounds = array<i64: 32, 32>}, {pipeline_mode = #tpu.pipeline_mode<synchronous>, transform_indices = @transform_2, window_bounds = array<i64: 16, 16>}, {pipeline_mode = #tpu.pipeline_mode<synchronous>, transform_indices = @transform_3, window_bounds = array<i64: 32, 256>}, {pipeline_mode = #tpu.pipeline_mode<synchronous>, transform_indices = @transform_4, window_bounds = array<i64: 32, 256>}, {pipeline_mode = #tpu.pipeline_mode<synchronous>, transform_indices = @transform_5, window_bounds = array<i64: 128, 32>}, {pipeline_mode = #tpu.pipeline_mode<synchronous>, transform_indices = @transform_6, window_bounds = array<i64: 16, 32>}]} {
    %c0 = arith.constant 0 : index
    %c0_0 = arith.constant 0 : index
    %0 = vector.load %arg1[%c0, %c0_0] : memref<16x32xf32, #tpu.memory_space<vmem>>, vector<16x32xf32>
    %c0_1 = arith.constant 0 : index
    %c0_2 = arith.constant 0 : index
    %1 = vector.load %arg2[%c0_1, %c0_2] : memref<32x32xf32, #tpu.memory_space<vmem>>, vector<32x32xf32>
    %2 = vector.extract_strided_slice %1 {offsets = [0, 0], sizes = [16, 32], strides = [1, 1]} : vector<32x32xf32> to vector<16x32xf32>
    %3 = vector.extract_strided_slice %1 {offsets = [16, 0], sizes = [16, 32], strides = [1, 1]} : vector<32x32xf32> to vector<16x32xf32>
    %c0_3 = arith.constant 0 : index
    %c0_4 = arith.constant 0 : index
    %4 = vector.load %arg3[%c0_3, %c0_4] : memref<16x16xf32, #tpu.memory_space<vmem>>, vector<16x16xf32>
    %5 = arith.mulf %0, %0 : vector<16x32xf32>
    %cst = arith.constant dense<0.000000e+00> : vector<16xf32>
    %6 = vector.multi_reduction <add>, %5, %cst [1] : vector<16x32xf32> to vector<16xf32>
    %7 = vector.shape_cast %6 : vector<16xf32> to vector<16x1xf32>
    %cst_5 = arith.constant 3.200000e+01 : f32
    %8 = vector.broadcast %cst_5 : f32 to vector<16x1xf32>
    %9 = arith.divf %7, %8 : vector<16x1xf32>
    %cst_6 = arith.constant 9.99999974E-6 : f32
    %10 = vector.broadcast %cst_6 : f32 to vector<16x1xf32>
    %11 = arith.addf %9, %10 : vector<16x1xf32>
    %12 = math.rsqrt %11 : vector<16x1xf32>
    %13 = vector.broadcast %12 : vector<16x1xf32> to vector<16x32xf32>
    %14 = arith.mulf %0, %13 : vector<16x32xf32>
    %15 = arith.truncf %14 : vector<16x32xf32> to vector<16x32xbf16>
    %c0_7 = arith.constant 0 : index
    %c0_8 = arith.constant 0 : index
    %16 = vector.load %arg4[%c0_7, %c0_8] : memref<32x256xbf16, #tpu.memory_space<vmem>>, vector<32x256xbf16>
    %cst_9 = arith.constant dense<0.000000e+00> : vector<16x256xf32>
    %17 = tpu.matmul %15, %16, %cst_9 {dimension_numbers = #tpu.dot_dimension_numbers<[1], [0], [0], [1], [0, 0, 1, 1], [], []>} : vector<16x32xbf16>, vector<32x256xbf16>, vector<16x256xf32> -> vector<16x256xf32>
    %18 = vector.extract_strided_slice %17 {offsets = [0, 0], sizes = [16, 32], strides = [1, 1]} : vector<16x256xf32> to vector<16x32xf32>
    %19 = vector.extract_strided_slice %17 {offsets = [0, 32], sizes = [16, 32], strides = [1, 1]} : vector<16x256xf32> to vector<16x32xf32>
    %20 = vector.extract_strided_slice %17 {offsets = [0, 64], sizes = [16, 32], strides = [1, 1]} : vector<16x256xf32> to vector<16x32xf32>
    %21 = vector.extract_strided_slice %17 {offsets = [0, 96], sizes = [16, 32], strides = [1, 1]} : vector<16x256xf32> to vector<16x32xf32>
    %22 = arith.mulf %18, %2 : vector<16x32xf32>
    %23 = arith.mulf %19, %3 : vector<16x32xf32>
    %24 = arith.addf %22, %23 : vector<16x32xf32>
    %25 = arith.truncf %24 : vector<16x32xf32> to vector<16x32xbf16>
    %26 = arith.mulf %20, %2 : vector<16x32xf32>
    %27 = arith.mulf %21, %3 : vector<16x32xf32>
    %28 = arith.addf %26, %27 : vector<16x32xf32>
    %29 = arith.truncf %28 : vector<16x32xf32> to vector<16x32xbf16>
    %cst_10 = arith.constant 0.000000e+00 : f32
    %30 = vector.broadcast %cst_10 : f32 to vector<16x32xf32>
    %31 = vector.extract_strided_slice %25 {offsets = [0, 0], sizes = [16, 8], strides = [1, 1]} : vector<16x32xbf16> to vector<16x8xbf16>
    %32 = vector.extract_strided_slice %29 {offsets = [0, 0], sizes = [16, 8], strides = [1, 1]} : vector<16x32xbf16> to vector<16x8xbf16>
    %cst_11 = arith.constant dense<0.000000e+00> : vector<16x16xf32>
    %33 = tpu.matmul %31, %32, %cst_11 {dimension_numbers = #tpu.dot_dimension_numbers<[1], [1], [0], [0], [0, 0, 1, 0], [], []>} : vector<16x8xbf16>, vector<16x8xbf16>, vector<16x16xf32> -> vector<16x16xf32>
    %34 = arith.addf %33, %4 : vector<16x16xf32>
    %cst_12 = arith.constant dense<0xFF800000> : vector<16xf32>
    %35 = vector.multi_reduction <maximumf>, %34, %cst_12 [1] : vector<16x16xf32> to vector<16xf32>
    %36 = vector.shape_cast %35 : vector<16xf32> to vector<16x1xf32>
    %37 = vector.broadcast %36 : vector<16x1xf32> to vector<16x16xf32>
    %38 = arith.subf %34, %37 : vector<16x16xf32>
    %39 = math.exp %38 : vector<16x16xf32>
    %cst_13 = arith.constant dense<0.000000e+00> : vector<16xf32>
    %40 = vector.multi_reduction <add>, %39, %cst_13 [1] : vector<16x16xf32> to vector<16xf32>
    %41 = vector.shape_cast %40 : vector<16xf32> to vector<16x1xf32>
    %42 = tpu.reciprocal %41 {approx = true} : vector<16x1xf32> -> vector<16x1xf32>
    %43 = vector.broadcast %42 : vector<16x1xf32> to vector<16x16xf32>
    %44 = arith.mulf %39, %43 : vector<16x16xf32>
    %45 = vector.extract_strided_slice %17 {offsets = [0, 128], sizes = [16, 32], strides = [1, 1]} : vector<16x256xf32> to vector<16x32xf32>
    %46 = arith.truncf %45 : vector<16x32xf32> to vector<16x32xbf16>
    %47 = arith.truncf %44 : vector<16x16xf32> to vector<16x16xbf16>
    %cst_14 = arith.constant dense<0.000000e+00> : vector<16x32xf32>
    %48 = tpu.matmul %47, %46, %cst_14 {dimension_numbers = #tpu.dot_dimension_numbers<[1], [0], [0], [1], [0, 0, 1, 1], [], []>} : vector<16x16xbf16>, vector<16x32xbf16>, vector<16x32xf32> -> vector<16x32xf32>
    %49 = arith.addf %30, %48 : vector<16x32xf32>
    %50 = vector.extract_strided_slice %25 {offsets = [0, 8], sizes = [16, 8], strides = [1, 1]} : vector<16x32xbf16> to vector<16x8xbf16>
    %51 = vector.extract_strided_slice %29 {offsets = [0, 8], sizes = [16, 8], strides = [1, 1]} : vector<16x32xbf16> to vector<16x8xbf16>
    %cst_15 = arith.constant dense<0.000000e+00> : vector<16x16xf32>
    %52 = tpu.matmul %50, %51, %cst_15 {dimension_numbers = #tpu.dot_dimension_numbers<[1], [1], [0], [0], [0, 0, 1, 0], [], []>} : vector<16x8xbf16>, vector<16x8xbf16>, vector<16x16xf32> -> vector<16x16xf32>
    %53 = arith.addf %52, %4 : vector<16x16xf32>
    %cst_16 = arith.constant dense<0xFF800000> : vector<16xf32>
    %54 = vector.multi_reduction <maximumf>, %53, %cst_16 [1] : vector<16x16xf32> to vector<16xf32>
    %55 = vector.shape_cast %54 : vector<16xf32> to vector<16x1xf32>
    %56 = vector.broadcast %55 : vector<16x1xf32> to vector<16x16xf32>
    %57 = arith.subf %53, %56 : vector<16x16xf32>
    %58 = math.exp %57 : vector<16x16xf32>
    %cst_17 = arith.constant dense<0.000000e+00> : vector<16xf32>
    %59 = vector.multi_reduction <add>, %58, %cst_17 [1] : vector<16x16xf32> to vector<16xf32>
    %60 = vector.shape_cast %59 : vector<16xf32> to vector<16x1xf32>
    %61 = tpu.reciprocal %60 {approx = true} : vector<16x1xf32> -> vector<16x1xf32>
    %62 = vector.broadcast %61 : vector<16x1xf32> to vector<16x16xf32>
    %63 = arith.mulf %58, %62 : vector<16x16xf32>
    %64 = vector.extract_strided_slice %17 {offsets = [0, 160], sizes = [16, 32], strides = [1, 1]} : vector<16x256xf32> to vector<16x32xf32>
    %65 = arith.truncf %64 : vector<16x32xf32> to vector<16x32xbf16>
    %66 = arith.truncf %63 : vector<16x16xf32> to vector<16x16xbf16>
    %cst_18 = arith.constant dense<0.000000e+00> : vector<16x32xf32>
    %67 = tpu.matmul %66, %65, %cst_18 {dimension_numbers = #tpu.dot_dimension_numbers<[1], [0], [0], [1], [0, 0, 1, 1], [], []>} : vector<16x16xbf16>, vector<16x32xbf16>, vector<16x32xf32> -> vector<16x32xf32>
    %68 = arith.addf %49, %67 : vector<16x32xf32>
    %69 = vector.extract_strided_slice %25 {offsets = [0, 16], sizes = [16, 8], strides = [1, 1]} : vector<16x32xbf16> to vector<16x8xbf16>
    %70 = vector.extract_strided_slice %29 {offsets = [0, 16], sizes = [16, 8], strides = [1, 1]} : vector<16x32xbf16> to vector<16x8xbf16>
    %cst_19 = arith.constant dense<0.000000e+00> : vector<16x16xf32>
    %71 = tpu.matmul %69, %70, %cst_19 {dimension_numbers = #tpu.dot_dimension_numbers<[1], [1], [0], [0], [0, 0, 1, 0], [], []>} : vector<16x8xbf16>, vector<16x8xbf16>, vector<16x16xf32> -> vector<16x16xf32>
    %72 = arith.addf %71, %4 : vector<16x16xf32>
    %cst_20 = arith.constant dense<0xFF800000> : vector<16xf32>
    %73 = vector.multi_reduction <maximumf>, %72, %cst_20 [1] : vector<16x16xf32> to vector<16xf32>
    %74 = vector.shape_cast %73 : vector<16xf32> to vector<16x1xf32>
    %75 = vector.broadcast %74 : vector<16x1xf32> to vector<16x16xf32>
    %76 = arith.subf %72, %75 : vector<16x16xf32>
    %77 = math.exp %76 : vector<16x16xf32>
    %cst_21 = arith.constant dense<0.000000e+00> : vector<16xf32>
    %78 = vector.multi_reduction <add>, %77, %cst_21 [1] : vector<16x16xf32> to vector<16xf32>
    %79 = vector.shape_cast %78 : vector<16xf32> to vector<16x1xf32>
    %80 = tpu.reciprocal %79 {approx = true} : vector<16x1xf32> -> vector<16x1xf32>
    %81 = vector.broadcast %80 : vector<16x1xf32> to vector<16x16xf32>
    %82 = arith.mulf %77, %81 : vector<16x16xf32>
    %83 = vector.extract_strided_slice %17 {offsets = [0, 192], sizes = [16, 32], strides = [1, 1]} : vector<16x256xf32> to vector<16x32xf32>
    %84 = arith.truncf %83 : vector<16x32xf32> to vector<16x32xbf16>
    %85 = arith.truncf %82 : vector<16x16xf32> to vector<16x16xbf16>
    %cst_22 = arith.constant dense<0.000000e+00> : vector<16x32xf32>
    %86 = tpu.matmul %85, %84, %cst_22 {dimension_numbers = #tpu.dot_dimension_numbers<[1], [0], [0], [1], [0, 0, 1, 1], [], []>} : vector<16x16xbf16>, vector<16x32xbf16>, vector<16x32xf32> -> vector<16x32xf32>
    %87 = arith.addf %68, %86 : vector<16x32xf32>
    %88 = vector.extract_strided_slice %25 {offsets = [0, 24], sizes = [16, 8], strides = [1, 1]} : vector<16x32xbf16> to vector<16x8xbf16>
    %89 = vector.extract_strided_slice %29 {offsets = [0, 24], sizes = [16, 8], strides = [1, 1]} : vector<16x32xbf16> to vector<16x8xbf16>
    %cst_23 = arith.constant dense<0.000000e+00> : vector<16x16xf32>
    %90 = tpu.matmul %88, %89, %cst_23 {dimension_numbers = #tpu.dot_dimension_numbers<[1], [1], [0], [0], [0, 0, 1, 0], [], []>} : vector<16x8xbf16>, vector<16x8xbf16>, vector<16x16xf32> -> vector<16x16xf32>
    %91 = arith.addf %90, %4 : vector<16x16xf32>
    %cst_24 = arith.constant dense<0xFF800000> : vector<16xf32>
    %92 = vector.multi_reduction <maximumf>, %91, %cst_24 [1] : vector<16x16xf32> to vector<16xf32>
    %93 = vector.shape_cast %92 : vector<16xf32> to vector<16x1xf32>
    %94 = vector.broadcast %93 : vector<16x1xf32> to vector<16x16xf32>
    %95 = arith.subf %91, %94 : vector<16x16xf32>
    %96 = math.exp %95 : vector<16x16xf32>
    %cst_25 = arith.constant dense<0.000000e+00> : vector<16xf32>
    %97 = vector.multi_reduction <add>, %96, %cst_25 [1] : vector<16x16xf32> to vector<16xf32>
    %98 = vector.shape_cast %97 : vector<16xf32> to vector<16x1xf32>
    %99 = tpu.reciprocal %98 {approx = true} : vector<16x1xf32> -> vector<16x1xf32>
    %100 = vector.broadcast %99 : vector<16x1xf32> to vector<16x16xf32>
    %101 = arith.mulf %96, %100 : vector<16x16xf32>
    %102 = vector.extract_strided_slice %17 {offsets = [0, 224], sizes = [16, 32], strides = [1, 1]} : vector<16x256xf32> to vector<16x32xf32>
    %103 = arith.truncf %102 : vector<16x32xf32> to vector<16x32xbf16>
    %104 = arith.truncf %101 : vector<16x16xf32> to vector<16x16xbf16>
    %cst_26 = arith.constant dense<0.000000e+00> : vector<16x32xf32>
    %105 = tpu.matmul %104, %103, %cst_26 {dimension_numbers = #tpu.dot_dimension_numbers<[1], [0], [0], [1], [0, 0, 1, 1], [], []>} : vector<16x16xbf16>, vector<16x32xbf16>, vector<16x32xf32> -> vector<16x32xf32>
    %106 = arith.addf %87, %105 : vector<16x32xf32>
    %107 = arith.addf %0, %106 : vector<16x32xf32>
    %108 = arith.mulf %107, %107 : vector<16x32xf32>
    %cst_27 = arith.constant dense<0.000000e+00> : vector<16xf32>
    %109 = vector.multi_reduction <add>, %108, %cst_27 [1] : vector<16x32xf32> to vector<16xf32>
    %110 = vector.shape_cast %109 : vector<16xf32> to vector<16x1xf32>
    %cst_28 = arith.constant 3.200000e+01 : f32
    %111 = vector.broadcast %cst_28 : f32 to vector<16x1xf32>
    %112 = arith.divf %110, %111 : vector<16x1xf32>
    %cst_29 = arith.constant 9.99999974E-6 : f32
    %113 = vector.broadcast %cst_29 : f32 to vector<16x1xf32>
    %114 = arith.addf %112, %113 : vector<16x1xf32>
    %115 = math.rsqrt %114 : vector<16x1xf32>
    %116 = vector.broadcast %115 : vector<16x1xf32> to vector<16x32xf32>
    %117 = arith.mulf %107, %116 : vector<16x32xf32>
    %118 = arith.truncf %117 : vector<16x32xf32> to vector<16x32xbf16>
    %c0_30 = arith.constant 0 : index
    %c0_31 = arith.constant 0 : index
    %119 = vector.load %arg5[%c0_30, %c0_31] : memref<32x256xbf16, #tpu.memory_space<vmem>>, vector<32x256xbf16>
    %cst_32 = arith.constant dense<0.000000e+00> : vector<16x256xf32>
    %120 = tpu.matmul %118, %119, %cst_32 {dimension_numbers = #tpu.dot_dimension_numbers<[1], [0], [0], [1], [0, 0, 1, 1], [], []>} : vector<16x32xbf16>, vector<32x256xbf16>, vector<16x256xf32> -> vector<16x256xf32>
    %121 = vector.extract_strided_slice %120 {offsets = [0, 0], sizes = [16, 128], strides = [1, 1]} : vector<16x256xf32> to vector<16x128xf32>
    %122 = vector.extract_strided_slice %120 {offsets = [0, 128], sizes = [16, 128], strides = [1, 1]} : vector<16x256xf32> to vector<16x128xf32>
    %123 = arith.negf %121 : vector<16x128xf32>
    %124 = math.exp %123 : vector<16x128xf32>
    %cst_33 = arith.constant 1.000000e+00 : f32
    %125 = vector.broadcast %cst_33 : f32 to vector<16x128xf32>
    %126 = arith.addf %125, %124 : vector<16x128xf32>
    %127 = arith.divf %125, %126 : vector<16x128xf32>
    %128 = arith.mulf %121, %127 : vector<16x128xf32>
    %129 = arith.mulf %128, %122 : vector<16x128xf32>
    %130 = arith.truncf %129 : vector<16x128xf32> to vector<16x128xbf16>
    %c0_34 = arith.constant 0 : index
    %c0_35 = arith.constant 0 : index
    %131 = vector.load %arg6[%c0_34, %c0_35] : memref<128x32xbf16, #tpu.memory_space<vmem>>, vector<128x32xbf16>
    %cst_36 = arith.constant dense<0.000000e+00> : vector<16x32xf32>
    %132 = tpu.matmul %130, %131, %cst_36 {dimension_numbers = #tpu.dot_dimension_numbers<[1], [0], [0], [1], [0, 0, 1, 1], [], []>} : vector<16x128xbf16>, vector<128x32xbf16>, vector<16x32xf32> -> vector<16x32xf32>
    %133 = arith.addf %107, %132 : vector<16x32xf32>
    %c0_37 = arith.constant 0 : index
    %c0_38 = arith.constant 0 : index
    %134 = vector.load %arg7[%c0_37, %c0_38] : memref<16x32xf32, #tpu.memory_space<vmem>>, vector<16x32xf32>
    tpu.vector_store %arg7[%c0_37, %c0_38], %133 {strides = array<i32>} : memref<16x32xf32, #tpu.memory_space<vmem>>, vector<16x32xf32>,
    return
  }
  func.func @transform_0(%arg0: i32) -> (i32, i32) {
    %c0_i32 = arith.constant 0 : i32
    %c0_i32_0 = arith.constant 0 : i32
    %c0_i32_1 = arith.constant 0 : i32
    return %c0_i32, %c0_i32_0 : i32, i32
  }
  func.func @transform_1(%arg0: i32) -> (i32, i32) {
    %c0_i32 = arith.constant 0 : i32
    %c0_i32_0 = arith.constant 0 : i32
    %c0_i32_1 = arith.constant 0 : i32
    return %c0_i32, %c0_i32_0 : i32, i32
  }
  func.func @transform_2(%arg0: i32) -> (i32, i32) {
    %c0_i32 = arith.constant 0 : i32
    %c0_i32_0 = arith.constant 0 : i32
    %c0_i32_1 = arith.constant 0 : i32
    return %c0_i32, %c0_i32_0 : i32, i32
  }
  func.func @transform_3(%arg0: i32) -> (i32, i32) {
    %c0_i32 = arith.constant 0 : i32
    %c0_i32_0 = arith.constant 0 : i32
    %c0_i32_1 = arith.constant 0 : i32
    return %c0_i32, %c0_i32_0 : i32, i32
  }
  func.func @transform_4(%arg0: i32) -> (i32, i32) {
    %c0_i32 = arith.constant 0 : i32
    %c0_i32_0 = arith.constant 0 : i32
    %c0_i32_1 = arith.constant 0 : i32
    return %c0_i32, %c0_i32_0 : i32, i32
  }
  func.func @transform_5(%arg0: i32) -> (i32, i32) {
    %c0_i32 = arith.constant 0 : i32
    %c0_i32_0 = arith.constant 0 : i32
    %c0_i32_1 = arith.constant 0 : i32
    return %c0_i32, %c0_i32_0 : i32, i32
  }
  func.func @transform_6(%arg0: i32) -> (i32, i32) {
    %c0_i32 = arith.constant 0 : i32
    %c0_i32_0 = arith.constant 0 : i32
    %c0_i32_1 = arith.constant 0 : i32
    return %c0_i32, %c0_i32_0 : i32, i32
  }
}

</mosaic_0001>

<llo_original>
// kernel: tpu_custom_call.1
$region0: #{tpu_custom_call.1}
  #allocation0 [shape = 'u32[]', space=smem, size = 0x4, offset = 0x4, fixed_abs, tag = 'smem constant byte address 0x4 - core index']
  #allocation1 [shape = 'u32[144,128]{1,0:T(1,128)}', space=vmem, size = 0x12000, scoped, tag = 'internal scratch']
  %s0 = inlined_call_operand.vmem [shape: f32[16,32], index: 0, kind: input, shape index: {}]
  %s1 = inlined_call_operand.vmem [shape: f32[32,32], index: 1, kind: input, shape index: {}]
  %s2 = inlined_call_operand.hbm [shape: f32[16,16], index: 2, kind: input, shape index: {}]
  %s3 = inlined_call_operand.vmem [shape: bf16[32,256], index: 3, kind: input, shape index: {}]
  %s4 = inlined_call_operand.hbm [shape: bf16[32,256], index: 4, kind: input, shape index: {}]
  %s5 = inlined_call_operand.vmem [shape: bf16[128,32], index: 5, kind: input, shape index: {}]
  %s6 = inlined_call_operand.hbm [shape: f32[16,32], index: 6, kind: output, shape index: {}]
  %s7 = sld [smem:[#allocation0]]
  $region42: #{tpu_custom_call.1} parent=0
    _
  %s9 = ssub.s32 1, %s7
  %s10 = scalar_select 0, %s9, %s7
  $region1: #{tpu_custom_call.1} parent=0
    #allocation2 [shape = 'u8[8192]{0}', space=vmem, size = 0x2000, scoped, tag = 'input window, operand 2, single buffered']
    #allocation3 [shape = 's32[1]{0}', space=sflag, size = 0x4, scoped, tag = 'scoped memory for tpu_custom_call.1']
    #allocation4 [shape = 's32[1]{0}', space=sflag, size = 0x4, scoped, tag = 'scoped memory for tpu_custom_call.1']
    #allocation5 [shape = 'u8[16384]{0}', space=vmem, size = 0x4000, scoped, tag = 'input window, operand 4, single buffered']
    #allocation6 [shape = 's32[1]{0}', space=sflag, size = 0x4, scoped, tag = 'scoped memory for tpu_custom_call.1']
    #allocation7 [shape = 'u8[8192]{0}', space=vmem, size = 0x2000, scoped, tag = 'output window, operand 0, single buffered']
    %11 = vsyncpa [#allocation3], 0
    %12 = vsyncpa [#allocation6], 0
    %13 = vsyncpa [#allocation4], 0
    // Predicated region
    $region2: #{tpu_custom_call.1} parent=1 // pred_check
      _
    $region3: #{tpu_custom_call.1} parent=1 // pred_check_branch
      %15 = sbr.rel (0) target = $region5
    $region4: #{tpu_custom_call.1} parent=1 // pred_region
      _
    $region5: #{tpu_custom_call.1} parent=1 // pred_fallthru
      _
    // Predicated region
    $region6: #{tpu_custom_call.1} parent=1 // pred_check
      _
    $region7: #{tpu_custom_call.1} parent=1 // pred_check_branch
      %17 = sbr.rel (0) target = $region9
    $region8: #{tpu_custom_call.1} parent=1 // pred_region
      _
    $region9: #{tpu_custom_call.1} parent=1 // pred_fallthru
      _
    // Predicated region
    $region10: #{tpu_custom_call.1} parent=1 // pred_check
      _
    $region11: #{tpu_custom_call.1} parent=1 // pred_check_branch
      %19 = sbr.rel (0) target = $region13
    $region12: #{tpu_custom_call.1} parent=1 // pred_region
      %s21 = ssub.s32 256, 256
      %22 = vsyncadd [#allocation3], %s21
      %s23 = sshll.u32 [#allocation2], 4
      %s24 = int_to_ptr.vmem [resolvable:$true] %s23
      %29 = dma.hbm_to_vmem [thread:$0]  %s2, 256, %s24, [#allocation3], 128, 128, 8
    $region13: #{tpu_custom_call.1} parent=1 // pred_fallthru
      _
    // Predicated region
    $region14: #{tpu_custom_call.1} parent=1 // pred_check
      _
    $region15: #{tpu_custom_call.1} parent=1 // pred_check_branch
      %31 = sbr.rel (0) target = $region17
    $region16: #{tpu_custom_call.1} parent=1 // pred_region
      _
    $region17: #{tpu_custom_call.1} parent=1 // pred_fallthru
      _
    // Predicated region
    $region18: #{tpu_custom_call.1} parent=1 // pred_check
      _
    $region19: #{tpu_custom_call.1} parent=1 // pred_check_branch
      %33 = sbr.rel (0) target = $region21
    $region20: #{tpu_custom_call.1} parent=1 // pred_region
      %s35 = ssub.s32 512, 512
      %36 = vsyncadd [#allocation6], %s35
      %s37 = sshll.u32 [#allocation5], 4
      %s38 = int_to_ptr.vmem [resolvable:$true] %s37
      %43 = dma.hbm_to_vmem [thread:$0]  %s4, 512, %s38, [#allocation6], 128, 128, 8
    $region21: #{tpu_custom_call.1} parent=1 // pred_fallthru
      _
    // Predicated region
    $region22: #{tpu_custom_call.1} parent=1 // pred_check
      _
    $region23: #{tpu_custom_call.1} parent=1 // pred_check_branch
      %45 = sbr.rel (0) target = $region25
    $region24: #{tpu_custom_call.1} parent=1 // pred_region
      _
    $region25: #{tpu_custom_call.1} parent=1 // pred_fallthru
      _
    // Predicated region
    $region26: #{tpu_custom_call.1} parent=1 // pred_check
      _
    $region27: #{tpu_custom_call.1} parent=1 // pred_check_branch
      %47 = sbr.rel (0) target = $region29
    $region28: #{tpu_custom_call.1} parent=1 // pred_region
      %48 = dma.done [#allocation3], 256
    $region29: #{tpu_custom_call.1} parent=1 // pred_fallthru
      _
    // Predicated region
    $region30: #{tpu_custom_call.1} parent=1 // pred_check
      _
    $region31: #{tpu_custom_call.1} parent=1 // pred_check_branch
      %50 = sbr.rel (0) target = $region33
    $region32: #{tpu_custom_call.1} parent=1 // pred_region
      %51 = dma.done [#allocation6], 512
    $region33: #{tpu_custom_call.1} parent=1 // pred_fallthru
      _
    %v53 = vld [vmem:[%s0] sm:$0xff]
    %v54 = vld [vmem:[%s0 + $0x8] sm:$0xff]
    %v55 = vld [vmem:[%s1] sm:$0xff]
    %v56 = vld [vmem:[%s1 + $0x8] sm:$0xff]
    %v57 = vld [vmem:[%s1 + $0x10] sm:$0xff]
    %v58 = vld [vmem:[%s1 + $0x18] sm:$0xff]
    %v59 = vld [vmem:[#allocation2] sm:$0xff]
    %v60 = vld [vmem:[#allocation2 + $0x8] sm:$0xff]
    %v61 = vmul.f32 %v53, %v53
    %v62 = vmul.f32 %v54, %v54
    %vm63 = vcmask 261120
    %v64 = vsel %vm63, %v61, 0.0
    %65 = vadd.xlane.f32.xlu0 %v64
    %v66 = vpop.xlane.xlu0 %65
    %v67 = vsel %vm63, %v62, 0.0
    %68 = vadd.xlane.f32.xlu0 %v67
    %v69 = vpop.xlane.xlu0 %68
    %v70 = vrcp.pop 32.0
    %v71 = vmul.f32 %v66, %v70
    %v72 = vmul.f32 %v69, %v70
    %v73 = vadd.f32 %v71, 1e-05
    %v74 = vadd.f32 %v72, 1e-05
    %v75 = vrsqrt.pop %v73
    %v76 = vrsqrt.pop %v74
    %v77 = vmul.f32 %v53, %v75
    %v78 = vmul.f32 %v54, %v76
    %v79 = vpack.c.bf16 %v78, %v77
    %v80 = vld [vmem:[%s3] sm:$0xff]
    %v81 = vld [vmem:[%s3 + $0x8] sm:$0xff]
    %v82 = vld [vmem:[%s3 + $0x10] sm:$0xff]
    %v83 = vld [vmem:[%s3 + $0x18] sm:$0xff]
    %v88 = vunpack.c.l.b16 %v80
    %v89 = vunpack.c.h.b16 %v80
    %v90 = vunpack.c.l.b16 %v81
    %v91 = vunpack.c.h.b16 %v81
    %v92 = vunpack.c.l.b16 %v82
    %v93 = vunpack.c.h.b16 %v82
    %v94 = vunpack.c.l.b16 %v83
    %v95 = vunpack.c.h.b16 %v83
    %v96 = vpack.c.b16 %v90, %v88
    %v97 = vpack.c.b16 %v91, %v89
    %v98 = vpack.c.b16 %v94, %v92
    %v99 = vpack.c.b16 %v95, %v93
    %v105 = vsel %vm63, %v79, 0
    %107 = vmatprep.subr.bf16.mxu0 %v97
    %108 = vmatpush1.bf16.msra.mxu0 %v96
    %109 = vmatprep.subr.bf16.mxu0 %v99
    %110 = vmatpush1.bf16.msra.mxu0 %v98
    %111 = vmatprep.subr.bf16.mxu0 0
    %112 = vmatpush1.bf16.msra.mxu0 0
    %113 = vmatprep.subr.bf16.mxu0 0
    %114 = vmatpush1.bf16.msra.mxu0 0
    %115 = vmatprep.subr.bf16.mxu0 0
    %116 = vmatpush1.bf16.msra.mxu0 0
    %117 = vmatprep.subr.bf16.mxu0 0
    %118 = vmatpush1.bf16.msra.mxu0 0
    %119 = vmatprep.subr.bf16.mxu0 0
    %120 = vmatpush1.bf16.msra.mxu0 0
    %121 = vmatprep.subr.bf16.mxu0 0
    %122 = vmatpush1.bf16.msra.mxu0 0
    %123 = vmatprep.subr.bf16.mxu0 0
    %124 = vmatpush1.bf16.msra.mxu0 0
    %125 = vmatprep.subr.bf16.mxu0 0
    %126 = vmatpush1.bf16.msra.mxu0 0
    %127 = vmatprep.subr.bf16.mxu0 0
    %128 = vmatpush1.bf16.msra.mxu0 0
    %129 = vmatprep.subr.bf16.mxu0 0
    %130 = vmatpush1.bf16.msra.mxu0 0
    %131 = vmatprep.subr.bf16.mxu0 0
    %132 = vmatpush1.bf16.msra.mxu0 0
    %133 = vmatprep.subr.bf16.mxu0 0
    %134 = vmatpush1.bf16.msra.mxu0 0
    %135 = vmatprep.subr.bf16.mxu0 0
    %136 = vmatpush1.bf16.msra.mxu0 0
    %137 = vmatprep.subr.bf16.mxu0 0
    %138 = vmatpush1.bf16.msra.mxu0 0
    %139 = vmatprep.mubr.bf16.mxu0 0
    %140 = vmatmul.mubr.bf16.gmra.mrb[0].mxu0 %v105
    %v141 = vpop.f32.mrb[0].mxu0
    %v142 = vadd.f32 0.0, %v141
    %v143 = vpop.f32.mrb[0].mxu0
    %v144 = vadd.f32 0.0, %v143
    %v145 = vpop.f32.mrb[0].mxu0
    %v146 = vadd.f32 0.0, %v145
    %v147 = vpop.f32.mrb[0].mxu0
    %v148 = vadd.f32 0.0, %v147
    %149 = vdwg.mxu0
    %v150 = vmul.f32 %v142, %v55
    %v151 = vmul.f32 %v146, %v56
    %154 = vrot.lane.b32.xlu0 %v57, 32
    %v155 = vpop.permute.xlu0 %154
    %156 = vrot.lane.b32.xlu0 %v58, 32
    %v157 = vpop.permute.xlu0 %156
    %v160 = vmul.f32 %v142, %v155
    %v161 = vmul.f32 %v146, %v157
    %164 = vrot.lane.b32.xlu0 %v160, 96
    %v165 = vpop.permute.xlu0 %164
    %166 = vrot.lane.b32.xlu0 %v161, 96
    %v167 = vpop.permute.xlu0 %166
    %v170 = vadd.f32 %v150, %v165
    %v171 = vadd.f32 %v151, %v167
    %v172 = vpack.c.bf16 %v171, %v170
    %175 = vrot.lane.b32.xlu0 %v55, 64
    %v176 = vpop.permute.xlu0 %175
    %177 = vrot.lane.b32.xlu0 %v56, 64
    %v178 = vpop.permute.xlu0 %177
    %v181 = vmul.f32 %v142, %v176
    %v182 = vmul.f32 %v146, %v178
    %183 = vrot.lane.b32.xlu0 %v57, 96
    %v184 = vpop.permute.xlu0 %183
    %185 = vrot.lane.b32.xlu0 %v58, 96
    %v186 = vpop.permute.xlu0 %185
    %v189 = vmul.f32 %v142, %v184
    %v190 = vmul.f32 %v146, %v186
    %193 = vrot.lane.b32.xlu0 %v189, 96
    %v194 = vpop.permute.xlu0 %193
    %195 = vrot.lane.b32.xlu0 %v190, 96
    %v196 = vpop.permute.xlu0 %195
    %v199 = vadd.f32 %v181, %v194
    %v200 = vadd.f32 %v182, %v196
    %v201 = vpack.c.bf16 %v200, %v199
    %203 = vrot.lane.b32.xlu0 %v201, 64
    %v204 = vpop.permute.xlu0 %203
    %vm205 = vcmask 64512
    %v207 = vsel %vm205, %v172, 0
    %v210 = vsel %vm205, %v204, 0
    %212 = vmatprep.subr.bf16.mxu0 0
    %213 = vmatpush1.bf16.xpose.msra.mxu0 %v210
    %214 = vmatprep.subr.bf16.mxu0 0
    %215 = vmatpush1.bf16.xpose.msra.mxu0 0
    %216 = vmatprep.subr.bf16.mxu0 0
    %217 = vmatpush1.bf16.xpose.msra.mxu0 0
    %218 = vmatprep.subr.bf16.mxu0 0
    %219 = vmatpush1.bf16.xpose.msra.mxu0 0
    %220 = vmatprep.subr.bf16.mxu0 0
    %221 = vmatpush1.bf16.xpose.msra.mxu0 0
    %222 = vmatprep.subr.bf16.mxu0 0
    %223 = vmatpush1.bf16.xpose.msra.mxu0 0
    %224 = vmatprep.subr.bf16.mxu0 0
    %225 = vmatpush1.bf16.xpose.msra.mxu0 0
    %226 = vmatprep.subr.bf16.mxu0 0
    %227 = vmatpush1.bf16.xpose.msra.mxu0 0
    %228 = vmatprep.subr.bf16.mxu0 0
    %229 = vmatpush1.bf16.xpose.msra.mxu0 0
    %230 = vmatprep.subr.bf16.mxu0 0
    %231 = vmatpush1.bf16.xpose.msra.mxu0 0
    %232 = vmatprep.subr.bf16.mxu0 0
    %233 = vmatpush1.bf16.xpose.msra.mxu0 0
    %234 = vmatprep.subr.bf16.mxu0 0
    %235 = vmatpush1.bf16.xpose.msra.mxu0 0
    %236 = vmatprep.subr.bf16.mxu0 0
    %237 = vmatpush1.bf16.xpose.msra.mxu0 0
    %238 = vmatprep.subr.bf16.mxu0 0
    %239 = vmatpush1.bf16.xpose.msra.mxu0 0
    %240 = vmatprep.subr.bf16.mxu0 0
    %241 = vmatpush1.bf16.xpose.msra.mxu0 0
    %242 = vmatprep.subr.bf16.mxu0 0
    %243 = vmatpush1.bf16.xpose.msra.mxu0 0
    %244 = vmatprep.mubr.bf16.mxu0 0
    %245 = vmatmul.mubr.bf16.gmra.mrb[0].mxu0 %v207
    %v246 = vpop.f32.mrb[0].mxu0
    %v247 = vadd.f32 %v59, %v246
    %v248 = vpop.f32.mrb[0].mxu0
    %v249 = vpop.f32.mrb[0].mxu0
    %v250 = vadd.f32 %v60, %v249
    %v251 = vpop.f32.mrb[0].mxu0
    %252 = vdwg.mxu0
    %vm253 = vcmask 130048
    %v254 = vsel %vm253, %v247, -inf
    %255 = vmax.xlane.f32.xlu0 %v254
    %v256 = vpop.xlane.xlu0 %255
    %v257 = vsel %vm253, %v250, -inf
    %258 = vmax.xlane.f32.xlu0 %v257
    %v259 = vpop.xlane.xlu0 %258
    %v260 = vsub.f32 %v247, %v256
    %v261 = vsub.f32 %v250, %v259
    %v262 = vmul.f32 %v260, 1.442695
    %v263 = vpow.pop %v262
    %v264 = vmul.f32 %v261, 1.442695
    %v265 = vpow.pop %v264
    %v266 = vsel %vm253, %v263, 0.0
    %267 = vadd.xlane.f32.xlu0 %v266
    %v268 = vpop.xlane.xlu0 %267
    %v269 = vsel %vm253, %v265, 0.0
    %270 = vadd.xlane.f32.xlu0 %v269
    %v271 = vpop.xlane.xlu0 %270
    %v272 = vrcp.pop %v268
    %v273 = vrcp.pop %v271
    %v274 = vmul.f32 %v263, %v272
    %v275 = vmul.f32 %v265, %v273
    %v276 = vpack.c.bf16 %v148, %v144
    %v277 = vpack.c.bf16 %v275, %v274
    %279 = vrot.lane.b32.xlu0 %v172, 120
    %v280 = vpop.permute.xlu0 %279
    %281 = vrot.lane.b32.xlu0 %v201, 56
    %v282 = vpop.permute.xlu0 %281
    %v284 = vsel %vm205, %v280, 0
    %v287 = vsel %vm205, %v282, 0
    %289 = vmatprep.subr.bf16.mxu0 0
    %290 = vmatpush1.bf16.xpose.msra.mxu0 %v287
    %291 = vmatprep.subr.bf16.mxu0 0
    %292 = vmatpush1.bf16.xpose.msra.mxu0 0
    %293 = vmatprep.subr.bf16.mxu0 0
    %294 = vmatpush1.bf16.xpose.msra.mxu0 0
    %295 = vmatprep.subr.bf16.mxu0 0
    %296 = vmatpush1.bf16.xpose.msra.mxu0 0
    %297 = vmatprep.subr.bf16.mxu0 0
    %298 = vmatpush1.bf16.xpose.msra.mxu0 0
    %299 = vmatprep.subr.bf16.mxu0 0
    %300 = vmatpush1.bf16.xpose.msra.mxu0 0
    %301 = vmatprep.subr.bf16.mxu0 0
    %302 = vmatpush1.bf16.xpose.msra.mxu0 0
    %303 = vmatprep.subr.bf16.mxu0 0
    %304 = vmatpush1.bf16.xpose.msra.mxu0 0
    %305 = vmatprep.subr.bf16.mxu0 0
    %306 = vmatpush1.bf16.xpose.msra.mxu0 0
    %307 = vmatprep.subr.bf16.mxu0 0
    %308 = vmatpush1.bf16.xpose.msra.mxu0 0
    %309 = vmatprep.subr.bf16.mxu0 0
    %310 = vmatpush1.bf16.xpose.msra.mxu0 0
    %311 = vmatprep.subr.bf16.mxu0 0
    %312 = vmatpush1.bf16.xpose.msra.mxu0 0
    %313 = vmatprep.subr.bf16.mxu0 0
    %314 = vmatpush1.bf16.xpose.msra.mxu0 0
    %315 = vmatprep.subr.bf16.mxu0 0
    %316 = vmatpush1.bf16.xpose.msra.mxu0 0
    %317 = vmatprep.subr.bf16.mxu0 0
    %318 = vmatpush1.bf16.xpose.msra.mxu0 0
    %319 = vmatprep.subr.bf16.mxu0 0
    %320 = vmatpush1.bf16.xpose.msra.mxu0 0
    %321 = vmatprep.mubr.bf16.mxu0 0
    %322 = vmatmul.mubr.bf16.gmra.mrb[0].mxu0 %v284
    %v323 = vpop.f32.mrb[0].mxu0
    %v324 = vadd.f32 %v59, %v323
    %v325 = vpop.f32.mrb[0].mxu0
    %v326 = vpop.f32.mrb[0].mxu0
    %v327 = vadd.f32 %v60, %v326
    %v328 = vpop.f32.mrb[0].mxu0
    %329 = vdwg.mxu0
    %v330 = vsel %vm253, %v324, -inf
    %331 = vmax.xlane.f32.xlu0 %v330
    %v332 = vpop.xlane.xlu0 %331
    %v333 = vsel %vm253, %v327, -inf
    %334 = vmax.xlane.f32.xlu0 %v333
    %v335 = vpop.xlane.xlu0 %334
    %v336 = vsub.f32 %v324, %v332
    %v337 = vsub.f32 %v327, %v335
    %v338 = vmul.f32 %v336, 1.442695
    %v339 = vpow.pop %v338
    %v340 = vmul.f32 %v337, 1.442695
    %v341 = vpow.pop %v340
    %v342 = vsel %vm253, %v339, 0.0
    %343 = vadd.xlane.f32.xlu0 %v342
    %v344 = vpop.xlane.xlu0 %343
    %v345 = vsel %vm253, %v341, 0.0
    %346 = vadd.xlane.f32.xlu0 %v345
    %v347 = vpop.xlane.xlu0 %346
    %v348 = vrcp.pop %v344
    %v349 = vrcp.pop %v347
    %v350 = vmul.f32 %v339, %v348
    %v351 = vmul.f32 %v341, %v349
    %v352 = vpack.c.bf16 %v351, %v350
    %354 = vrot.lane.b32.xlu0 %v276, 96
    %v355 = vpop.permute.xlu0 %354
    %v358 = vsel %vm253, %v352, 0
    %360 = vmatprep.subr.bf16.mxu0 0
    %361 = vmatpush1.bf16.msra.mxu0 %v355
    %362 = vmatprep.subr.bf16.mxu0 0
    %363 = vmatpush1.bf16.msra.mxu0 0
    %364 = vmatprep.subr.bf16.mxu0 0
    %365 = vmatpush1.bf16.msra.mxu0 0
    %366 = vmatprep.subr.bf16.mxu0 0
    %367 = vmatpush1.bf16.msra.mxu0 0
    %368 = vmatprep.subr.bf16.mxu0 0
    %369 = vmatpush1.bf16.msra.mxu0 0
    %370 = vmatprep.subr.bf16.mxu0 0
    %371 = vmatpush1.bf16.msra.mxu0 0
    %372 = vmatprep.subr.bf16.mxu0 0
    %373 = vmatpush1.bf16.msra.mxu0 0
    %374 = vmatprep.subr.bf16.mxu0 0
    %375 = vmatpush1.bf16.msra.mxu0 0
    %376 = vmatprep.subr.bf16.mxu0 0
    %377 = vmatpush1.bf16.msra.mxu0 0
    %378 = vmatprep.subr.bf16.mxu0 0
    %379 = vmatpush1.bf16.msra.mxu0 0
    %380 = vmatprep.subr.bf16.mxu0 0
    %381 = vmatpush1.bf16.msra.mxu0 0
    %382 = vmatprep.subr.bf16.mxu0 0
    %383 = vmatpush1.bf16.msra.mxu0 0
    %384 = vmatprep.subr.bf16.mxu0 0
    %385 = vmatpush1.bf16.msra.mxu0 0
    %386 = vmatprep.subr.bf16.mxu0 0
    %387 = vmatpush1.bf16.msra.mxu0 0
    %388 = vmatprep.subr.bf16.mxu0 0
    %389 = vmatpush1.bf16.msra.mxu0 0
    %390 = vmatprep.subr.bf16.mxu0 0
    %391 = vmatpush1.bf16.msra.mxu0 0
    %392 = vmatprep.mubr.bf16.mxu0 0
    %393 = vmatmul.mubr.bf16.gmra.mrb[0].mxu0 %v358
    %v394 = vpop.f32.mrb[0].mxu0
    %v395 = vadd.f32 0.0, %v394
    %v396 = vpop.f32.mrb[0].mxu0
    %v397 = vpop.f32.mrb[0].mxu0
    %v398 = vadd.f32 0.0, %v397
    %v399 = vpop.f32.mrb[0].mxu0
    %400 = vdwg.mxu0
    %v402 = vsel %vm253, %v277, 0
    %404 = vmatprep.subr.bf16.mxu0 0
    %405 = vmatpush1.bf16.msra.mxu0 %v276
    %406 = vmatprep.subr.bf16.mxu0 0
    %407 = vmatpush1.bf16.msra.mxu0 0
    %408 = vmatprep.subr.bf16.mxu0 0
    %409 = vmatpush1.bf16.msra.mxu0 0
    %410 = vmatprep.subr.bf16.mxu0 0
    %411 = vmatpush1.bf16.msra.mxu0 0
    %412 = vmatprep.subr.bf16.mxu0 0
    %413 = vmatpush1.bf16.msra.mxu0 0
    %414 = vmatprep.subr.bf16.mxu0 0
    %415 = vmatpush1.bf16.msra.mxu0 0
    %416 = vmatprep.subr.bf16.mxu0 0
    %417 = vmatpush1.bf16.msra.mxu0 0
    %418 = vmatprep.subr.bf16.mxu0 0
    %419 = vmatpush1.bf16.msra.mxu0 0
    %420 = vmatprep.subr.bf16.mxu0 0
    %421 = vmatpush1.bf16.msra.mxu0 0
    %422 = vmatprep.subr.bf16.mxu0 0
    %423 = vmatpush1.bf16.msra.mxu0 0
    %424 = vmatprep.subr.bf16.mxu0 0
    %425 = vmatpush1.bf16.msra.mxu0 0
    %426 = vmatprep.subr.bf16.mxu0 0
    %427 = vmatpush1.bf16.msra.mxu0 0
    %428 = vmatprep.subr.bf16.mxu0 0
    %429 = vmatpush1.bf16.msra.mxu0 0
    %430 = vmatprep.subr.bf16.mxu0 0
    %431 = vmatpush1.bf16.msra.mxu0 0
    %432 = vmatprep.subr.bf16.mxu0 0
    %433 = vmatpush1.bf16.msra.mxu0 0
    %434 = vmatprep.subr.bf16.mxu0 0
    %435 = vmatpush1.bf16.msra.mxu0 0
    %436 = vmatprep.mubr.bf16.mxu0 0
    %437 = vmatmul.mubr.bf16.gmra.mrb[0].mxu0 %v402
    %v438 = vpop.f32.mrb[0].mxu0
    %v439 = vadd.f32 %v395, %v438
    %v440 = vpop.f32.mrb[0].mxu0
    %v441 = vpop.f32.mrb[0].mxu0
    %v442 = vadd.f32 %v398, %v441
    %v443 = vpop.f32.mrb[0].mxu0
    %444 = vdwg.mxu0
    %445 = vrot.lane.b32.xlu0 %v172, 112
    %v446 = vpop.permute.xlu0 %445
    %447 = vrot.lane.b32.xlu0 %v201, 48
    %v448 = vpop.permute.xlu0 %447
    %v450 = vsel %vm205, %v446, 0
    %v453 = vsel %vm205, %v448, 0
    %455 = vmatprep.subr.bf16.mxu0 0
    %456 = vmatpush1.bf16.xpose.msra.mxu0 %v453
    %457 = vmatprep.subr.bf16.mxu0 0
    %458 = vmatpush1.bf16.xpose.msra.mxu0 0
    %459 = vmatprep.subr.bf16.mxu0 0
    %460 = vmatpush1.bf16.xpose.msra.mxu0 0
    %461 = vmatprep.subr.bf16.mxu0 0
    %462 = vmatpush1.bf16.xpose.msra.mxu0 0
    %463 = vmatprep.subr.bf16.mxu0 0
    %464 = vmatpush1.bf16.xpose.msra.mxu0 0
    %465 = vmatprep.subr.bf16.mxu0 0
    %466 = vmatpush1.bf16.xpose.msra.mxu0 0
    %467 = vmatprep.subr.bf16.mxu0 0
    %468 = vmatpush1.bf16.xpose.msra.mxu0 0
    %469 = vmatprep.subr.bf16.mxu0 0
    %470 = vmatpush1.bf16.xpose.msra.mxu0 0
    %471 = vmatprep.subr.bf16.mxu0 0
    %472 = vmatpush1.bf16.xpose.msra.mxu0 0
    %473 = vmatprep.subr.bf16.mxu0 0
    %474 = vmatpush1.bf16.xpose.msra.mxu0 0
    %475 = vmatprep.subr.bf16.mxu0 0
    %476 = vmatpush1.bf16.xpose.msra.mxu0 0
    %477 = vmatprep.subr.bf16.mxu0 0
    %478 = vmatpush1.bf16.xpose.msra.mxu0 0
    %479 = vmatprep.subr.bf16.mxu0 0
    %480 = vmatpush1.bf16.xpose.msra.mxu0 0
    %481 = vmatprep.subr.bf16.mxu0 0
    %482 = vmatpush1.bf16.xpose.msra.mxu0 0
    %483 = vmatprep.subr.bf16.mxu0 0
    %484 = vmatpush1.bf16.xpose.msra.mxu0 0
    %485 = vmatprep.subr.bf16.mxu0 0
    %486 = vmatpush1.bf16.xpose.msra.mxu0 0
    %487 = vmatprep.mubr.bf16.mxu0 0
    %488 = vmatmul.mubr.bf16.gmra.mrb[0].mxu0 %v450
    %v489 = vpop.f32.mrb[0].mxu0
    %v490 = vadd.f32 %v59, %v489
    %v491 = vpop.f32.mrb[0].mxu0
    %v492 = vpop.f32.mrb[0].mxu0
    %v493 = vadd.f32 %v60, %v492
    %v494 = vpop.f32.mrb[0].mxu0
    %495 = vdwg.mxu0
    %v496 = vsel %vm253, %v490, -inf
    %497 = vmax.xlane.f32.xlu0 %v496
    %v498 = vpop.xlane.xlu0 %497
    %v499 = vsel %vm253, %v493, -inf
    %500 = vmax.xlane.f32.xlu0 %v499
    %v501 = vpop.xlane.xlu0 %500
    %v502 = vsub.f32 %v490, %v498
    %v503 = vsub.f32 %v493, %v501
    %v504 = vmul.f32 %v502, 1.442695
    %v505 = vpow.pop %v504
    %v506 = vmul.f32 %v503, 1.442695
    %v507 = vpow.pop %v506
    %v508 = vsel %vm253, %v505, 0.0
    %509 = vadd.xlane.f32.xlu0 %v508
    %v510 = vpop.xlane.xlu0 %509
    %v511 = vsel %vm253, %v507, 0.0
    %512 = vadd.xlane.f32.xlu0 %v511
    %v513 = vpop.xlane.xlu0 %512
    %v514 = vrcp.pop %v510
    %v515 = vrcp.pop %v513
    %v516 = vmul.f32 %v505, %v514
    %v517 = vmul.f32 %v507, %v515
    %v518 = vpack.c.bf16 %v517, %v516
    %519 = vrot.lane.b32.xlu0 %v276, 64
    %v520 = vpop.permute.xlu0 %519
    %v523 = vsel %vm253, %v518, 0
    %525 = vmatprep.subr.bf16.mxu0 0
    %526 = vmatpush1.bf16.msra.mxu0 %v520
    %527 = vmatprep.subr.bf16.mxu0 0
    %528 = vmatpush1.bf16.msra.mxu0 0
    %529 = vmatprep.subr.bf16.mxu0 0
    %530 = vmatpush1.bf16.msra.mxu0 0
    %531 = vmatprep.subr.bf16.mxu0 0
    %532 = vmatpush1.bf16.msra.mxu0 0
    %533 = vmatprep.subr.bf16.mxu0 0
    %534 = vmatpush1.bf16.msra.mxu0 0
    %535 = vmatprep.subr.bf16.mxu0 0
    %536 = vmatpush1.bf16.msra.mxu0 0
    %537 = vmatprep.subr.bf16.mxu0 0
    %538 = vmatpush1.bf16.msra.mxu0 0
    %539 = vmatprep.subr.bf16.mxu0 0
    %540 = vmatpush1.bf16.msra.mxu0 0
    %541 = vmatprep.subr.bf16.mxu0 0
    %542 = vmatpush1.bf16.msra.mxu0 0
    %543 = vmatprep.subr.bf16.mxu0 0
    %544 = vmatpush1.bf16.msra.mxu0 0
    %545 = vmatprep.subr.bf16.mxu0 0
    %546 = vmatpush1.bf16.msra.mxu0 0
    %547 = vmatprep.subr.bf16.mxu0 0
    %548 = vmatpush1.bf16.msra.mxu0 0
    %549 = vmatprep.subr.bf16.mxu0 0
    %550 = vmatpush1.bf16.msra.mxu0 0
    %551 = vmatprep.subr.bf16.mxu0 0
    %552 = vmatpush1.bf16.msra.mxu0 0
    %553 = vmatprep.subr.bf16.mxu0 0
    %554 = vmatpush1.bf16.msra.mxu0 0
    %555 = vmatprep.subr.bf16.mxu0 0
    %556 = vmatpush1.bf16.msra.mxu0 0
    %557 = vmatprep.mubr.bf16.mxu0 0
    %558 = vmatmul.mubr.bf16.gmra.mrb[0].mxu0 %v523
    %v559 = vpop.f32.mrb[0].mxu0
    %v560 = vadd.f32 0.0, %v559
    %v561 = vpop.f32.mrb[0].mxu0
    %v562 = vpop.f32.mrb[0].mxu0
    %v563 = vadd.f32 0.0, %v562
    %v564 = vpop.f32.mrb[0].mxu0
    %565 = vdwg.mxu0
    %v566 = vadd.f32 %v439, %v560
    %v567 = vadd.f32 %v442, %v563
    %568 = vrot.lane.b32.xlu0 %v172, 104
    %v569 = vpop.permute.xlu0 %568
    %570 = vrot.lane.b32.xlu0 %v201, 40
    %v571 = vpop.permute.xlu0 %570
    %v573 = vsel %vm205, %v569, 0
    %v576 = vsel %vm205, %v571, 0
    %578 = vmatprep.subr.bf16.mxu0 0
    %579 = vmatpush1.bf16.xpose.msra.mxu0 %v576
    %580 = vmatprep.subr.bf16.mxu0 0
    %581 = vmatpush1.bf16.xpose.msra.mxu0 0
    %582 = vmatprep.subr.bf16.mxu0 0
    %583 = vmatpush1.bf16.xpose.msra.mxu0 0
    %584 = vmatprep.subr.bf16.mxu0 0
    %585 = vmatpush1.bf16.xpose.msra.mxu0 0
    %586 = vmatprep.subr.bf16.mxu0 0
    %587 = vmatpush1.bf16.xpose.msra.mxu0 0
    %588 = vmatprep.subr.bf16.mxu0 0
    %589 = vmatpush1.bf16.xpose.msra.mxu0 0
    %590 = vmatprep.subr.bf16.mxu0 0
    %591 = vmatpush1.bf16.xpose.msra.mxu0 0
    %592 = vmatprep.subr.bf16.mxu0 0
    %593 = vmatpush1.bf16.xpose.msra.mxu0 0
    %594 = vmatprep.subr.bf16.mxu0 0
    %595 = vmatpush1.bf16.xpose.msra.mxu0 0
    %596 = vmatprep.subr.bf16.mxu0 0
    %597 = vmatpush1.bf16.xpose.msra.mxu0 0
    %598 = vmatprep.subr.bf16.mxu0 0
    %599 = vmatpush1.bf16.xpose.msra.mxu0 0
    %600 = vmatprep.subr.bf16.mxu0 0
    %601 = vmatpush1.bf16.xpose.msra.mxu0 0
    %602 = vmatprep.subr.bf16.mxu0 0
    %603 = vmatpush1.bf16.xpose.msra.mxu0 0
    %604 = vmatprep.subr.bf16.mxu0 0
    %605 = vmatpush1.bf16.xpose.msra.mxu0 0
    %606 = vmatprep.subr.bf16.mxu0 0
    %607 = vmatpush1.bf16.xpose.msra.mxu0 0
    %608 = vmatprep.subr.bf16.mxu0 0
    %609 = vmatpush1.bf16.xpose.msra.mxu0 0
    %610 = vmatprep.mubr.bf16.mxu0 0
    %611 = vmatmul.mubr.bf16.gmra.mrb[0].mxu0 %v573
    %v612 = vpop.f32.mrb[0].mxu0
    %v613 = vadd.f32 %v59, %v612
    %v614 = vpop.f32.mrb[0].mxu0
    %v615 = vpop.f32.mrb[0].mxu0
    %v616 = vadd.f32 %v60, %v615
    %v617 = vpop.f32.mrb[0].mxu0
    %618 = vdwg.mxu0
    %v619 = vsel %vm253, %v613, -inf
    %620 = vmax.xlane.f32.xlu0 %v619
    %v621 = vpop.xlane.xlu0 %620
    %v622 = vsel %vm253, %v616, -inf
    %623 = vmax.xlane.f32.xlu0 %v622
    %v624 = vpop.xlane.xlu0 %623
    %v625 = vsub.f32 %v613, %v621
    %v626 = vsub.f32 %v616, %v624
    %v627 = vmul.f32 %v625, 1.442695
    %v628 = vpow.pop %v627
    %v629 = vmul.f32 %v626, 1.442695
    %v630 = vpow.pop %v629
    %v631 = vsel %vm253, %v628, 0.0
    %632 = vadd.xlane.f32.xlu0 %v631
    %v633 = vpop.xlane.xlu0 %632
    %v634 = vsel %vm253, %v630, 0.0
    %635 = vadd.xlane.f32.xlu0 %v634
    %v636 = vpop.xlane.xlu0 %635
    %v637 = vrcp.pop %v633
    %v638 = vrcp.pop %v636
    %v639 = vmul.f32 %v628, %v637
    %v640 = vmul.f32 %v630, %v638
    %v641 = vpack.c.bf16 %v640, %v639
    %642 = vrot.lane.b32.xlu0 %v276, 32
    %v643 = vpop.permute.xlu0 %642
    %v646 = vsel %vm253, %v641, 0
    %648 = vmatprep.subr.bf16.mxu0 0
    %649 = vmatpush1.bf16.msra.mxu0 %v643
    %650 = vmatprep.subr.bf16.mxu0 0
    %651 = vmatpush1.bf16.msra.mxu0 0
    %652 = vmatprep.subr.bf16.mxu0 0
    %653 = vmatpush1.bf16.msra.mxu0 0
    %654 = vmatprep.subr.bf16.mxu0 0
    %655 = vmatpush1.bf16.msra.mxu0 0
    %656 = vmatprep.subr.bf16.mxu0 0
    %657 = vmatpush1.bf16.msra.mxu0 0
    %658 = vmatprep.subr.bf16.mxu0 0
    %659 = vmatpush1.bf16.msra.mxu0 0
    %660 = vmatprep.subr.bf16.mxu0 0
    %661 = vmatpush1.bf16.msra.mxu0 0
    %662 = vmatprep.subr.bf16.mxu0 0
    %663 = vmatpush1.bf16.msra.mxu0 0
    %664 = vmatprep.subr.bf16.mxu0 0
    %665 = vmatpush1.bf16.msra.mxu0 0
    %666 = vmatprep.subr.bf16.mxu0 0
    %667 = vmatpush1.bf16.msra.mxu0 0
    %668 = vmatprep.subr.bf16.mxu0 0
    %669 = vmatpush1.bf16.msra.mxu0 0
    %670 = vmatprep.subr.bf16.mxu0 0
    %671 = vmatpush1.bf16.msra.mxu0 0
    %672 = vmatprep.subr.bf16.mxu0 0
    %673 = vmatpush1.bf16.msra.mxu0 0
    %674 = vmatprep.subr.bf16.mxu0 0
    %675 = vmatpush1.bf16.msra.mxu0 0
    %676 = vmatprep.subr.bf16.mxu0 0
    %677 = vmatpush1.bf16.msra.mxu0 0
    %678 = vmatprep.subr.bf16.mxu0 0
    %679 = vmatpush1.bf16.msra.mxu0 0
    %680 = vmatprep.mubr.bf16.mxu0 0
    %681 = vmatmul.mubr.bf16.gmra.mrb[0].mxu0 %v646
    %v682 = vpop.f32.mrb[0].mxu0
    %v683 = vadd.f32 0.0, %v682
    %v684 = vpop.f32.mrb[0].mxu0
    %v685 = vpop.f32.mrb[0].mxu0
    %v686 = vadd.f32 0.0, %v685
    %v687 = vpop.f32.mrb[0].mxu0
    %688 = vdwg.mxu0
    %v689 = vadd.f32 %v566, %v683
    %v690 = vadd.f32 %v567, %v686
    %v691 = vadd.f32 %v53, %v689
    %v692 = vadd.f32 %v54, %v690
    %v693 = vmul.f32 %v691, %v691
    %v694 = vmul.f32 %v692, %v692
    %v695 = vsel %vm63, %v693, 0.0
    %696 = vadd.xlane.f32.xlu0 %v695
    %v697 = vpop.xlane.xlu0 %696
    %v698 = vsel %vm63, %v694, 0.0
    %699 = vadd.xlane.f32.xlu0 %v698
    %v700 = vpop.xlane.xlu0 %699
    %v701 = vmul.f32 %v697, %v70
    %v702 = vmul.f32 %v700, %v70
    %v703 = vadd.f32 %v701, 1e-05
    %v704 = vadd.f32 %v702, 1e-05
    %v705 = vrsqrt.pop %v703
    %v706 = vrsqrt.pop %v704
    %v707 = vmul.f32 %v691, %v705
    %v708 = vmul.f32 %v692, %v706
    %v709 = vpack.c.bf16 %v708, %v707
    %v710 = vld [vmem:[#allocation5] sm:$0xff]
    %v711 = vld [vmem:[#allocation5 + $0x8] sm:$0xff]
    %v712 = vld [vmem:[#allocation5 + $0x10] sm:$0xff]
    %v713 = vld [vmem:[#allocation5 + $0x18] sm:$0xff]
    %v718 = vunpack.c.l.b16 %v710
    %v719 = vunpack.c.h.b16 %v710
    %v720 = vunpack.c.l.b16 %v711
    %v721 = vunpack.c.h.b16 %v711
    %v722 = vunpack.c.l.b16 %v712
    %v723 = vunpack.c.h.b16 %v712
    %v724 = vunpack.c.l.b16 %v713
    %v725 = vunpack.c.h.b16 %v713
    %v726 = vpack.c.b16 %v720, %v718
    %v727 = vpack.c.b16 %v721, %v719
    %v728 = vpack.c.b16 %v724, %v722
    %v729 = vpack.c.b16 %v725, %v723
    %v735 = vsel %vm63, %v709, 0
    %737 = vmatprep.subr.bf16.mxu0 %v727
    %738 = vmatpush1.bf16.msra.mxu0 %v726
    %739 = vmatprep.subr.bf16.mxu0 %v729
    %740 = vmatpush1.bf16.msra.mxu0 %v728
    %741 = vmatprep.subr.bf16.mxu0 0
    %742 = vmatpush1.bf16.msra.mxu0 0
    %743 = vmatprep.subr.bf16.mxu0 0
    %744 = vmatpush1.bf16.msra.mxu0 0
    %745 = vmatprep.subr.bf16.mxu0 0
    %746 = vmatpush1.bf16.msra.mxu0 0
    %747 = vmatprep.subr.bf16.mxu0 0
    %748 = vmatpush1.bf16.msra.mxu0 0
    %749 = vmatprep.subr.bf16.mxu0 0
    %750 = vmatpush1.bf16.msra.mxu0 0
    %751 = vmatprep.subr.bf16.mxu0 0
    %752 = vmatpush1.bf16.msra.mxu0 0
    %753 = vmatprep.subr.bf16.mxu0 0
    %754 = vmatpush1.bf16.msra.mxu0 0
    %755 = vmatprep.subr.bf16.mxu0 0
    %756 = vmatpush1.bf16.msra.mxu0 0
    %757 = vmatprep.subr.bf16.mxu0 0
    %758 = vmatpush1.bf16.msra.mxu0 0
    %759 = vmatprep.subr.bf16.mxu0 0
    %760 = vmatpush1.bf16.msra.mxu0 0
    %761 = vmatprep.subr.bf16.mxu0 0
    %762 = vmatpush1.bf16.msra.mxu0 0
    %763 = vmatprep.subr.bf16.mxu0 0
    %764 = vmatpush1.bf16.msra.mxu0 0
    %765 = vmatprep.subr.bf16.mxu0 0
    %766 = vmatpush1.bf16.msra.mxu0 0
    %767 = vmatprep.subr.bf16.mxu0 0
    %768 = vmatpush1.bf16.msra.mxu0 0
    %769 = vmatprep.mubr.bf16.mxu0 0
    %770 = vmatmul.mubr.bf16.gmra.mrb[0].mxu0 %v735
    %v771 = vpop.f32.mrb[0].mxu0
    %v772 = vadd.f32 0.0, %v771
    %v773 = vpop.f32.mrb[0].mxu0
    %v774 = vadd.f32 0.0, %v773
    %v775 = vpop.f32.mrb[0].mxu0
    %v776 = vadd.f32 0.0, %v775
    %v777 = vpop.f32.mrb[0].mxu0
    %v778 = vadd.f32 0.0, %v777
    %779 = vdwg.mxu0
    %v780 = vxor.u32 %v772, 2147483648
    %v781 = vxor.u32 %v776, 2147483648
    %v782 = vmul.f32 %v780, 1.442695
    %v783 = vpow.pop %v782
    %v784 = vmul.f32 %v781, 1.442695
    %v785 = vpow.pop %v784
    %v786 = vadd.f32 %v783, 1.0
    %v787 = vadd.f32 %v785, 1.0
    %v788 = vrcp.pop %v786
    %v789 = vmul.f32 1.0, %v788
    %v790 = vrcp.pop %v787
    %v791 = vmul.f32 1.0, %v790
    %v792 = vmul.f32 %v772, %v789
    %v793 = vmul.f32 %v776, %v791
    %v794 = vmul.f32 %v792, %v774
    %v795 = vmul.f32 %v793, %v778
    %v796 = vpack.c.bf16 %v795, %v794
    %v797 = vld [vmem:[%s5] sm:$0xf]
    %v798 = vld [vmem:[%s5 + $0x4] sm:$0xf]
    %v799 = vld [vmem:[%s5 + $0x8] sm:$0xf]
    %v800 = vld [vmem:[%s5 + $0xc] sm:$0xf]
    %v801 = vld [vmem:[%s5 + $0x10] sm:$0xf]
    %v802 = vld [vmem:[%s5 + $0x14] sm:$0xf]
    %v803 = vld [vmem:[%s5 + $0x18] sm:$0xf]
    %v804 = vld [vmem:[%s5 + $0x1c] sm:$0xf]
    %v805 = vld [vmem:[%s5 + $0x20] sm:$0xf]
    %v806 = vld [vmem:[%s5 + $0x24] sm:$0xf]
    %v807 = vld [vmem:[%s5 + $0x28] sm:$0xf]
    %v808 = vld [vmem:[%s5 + $0x2c] sm:$0xf]
    %v809 = vld [vmem:[%s5 + $0x30] sm:$0xf]
    %v810 = vld [vmem:[%s5 + $0x34] sm:$0xf]
    %v811 = vld [vmem:[%s5 + $0x38] sm:$0xf]
    %v812 = vld [vmem:[%s5 + $0x3c] sm:$0xf]
    %v829 = vunpack.c.l.b16 %v797
    %v830 = vunpack.c.l.b16 %v798
    %v831 = vunpack.c.l.b16 %v799
    %v832 = vunpack.c.l.b16 %v800
    %v833 = vunpack.c.l.b16 %v801
    %v834 = vunpack.c.l.b16 %v802
    %v835 = vunpack.c.l.b16 %v803
    %v836 = vunpack.c.l.b16 %v804
    %v837 = vunpack.c.l.b16 %v805
    %v838 = vunpack.c.l.b16 %v806
    %v839 = vunpack.c.l.b16 %v807
    %v840 = vunpack.c.l.b16 %v808
    %v841 = vunpack.c.l.b16 %v809
    %v842 = vunpack.c.l.b16 %v810
    %v843 = vunpack.c.l.b16 %v811
    %v844 = vunpack.c.l.b16 %v812
    %v845 = vpack.c.b16 %v830, %v829
    %v846 = vpack.c.b16 %v832, %v831
    %v847 = vpack.c.b16 %v834, %v833
    %v848 = vpack.c.b16 %v836, %v835
    %v849 = vpack.c.b16 %v838, %v837
    %v850 = vpack.c.b16 %v840, %v839
    %v851 = vpack.c.b16 %v842, %v841
    %v852 = vpack.c.b16 %v844, %v843
    %861 = vmatprep.subr.bf16.mxu0 0
    %862 = vmatpush1.bf16.msra.mxu0 %v845
    %863 = vmatprep.subr.bf16.mxu0 0
    %864 = vmatpush1.bf16.msra.mxu0 %v846
    %865 = vmatprep.subr.bf16.mxu0 0
    %866 = vmatpush1.bf16.msra.mxu0 %v847
    %867 = vmatprep.subr.bf16.mxu0 0
    %868 = vmatpush1.bf16.msra.mxu0 %v848
    %869 = vmatprep.subr.bf16.mxu0 0
    %870 = vmatpush1.bf16.msra.mxu0 %v849
    %871 = vmatprep.subr.bf16.mxu0 0
    %872 = vmatpush1.bf16.msra.mxu0 %v850
    %873 = vmatprep.subr.bf16.mxu0 0
    %874 = vmatpush1.bf16.msra.mxu0 %v851
    %875 = vmatprep.subr.bf16.mxu0 0
    %876 = vmatpush1.bf16.msra.mxu0 %v852
    %877 = vmatprep.subr.bf16.mxu0 0
    %878 = vmatpush1.bf16.msra.mxu0 0
    %879 = vmatprep.subr.bf16.mxu0 0
    %880 = vmatpush1.bf16.msra.mxu0 0
    %881 = vmatprep.subr.bf16.mxu0 0
    %882 = vmatpush1.bf16.msra.mxu0 0
    %883 = vmatprep.subr.bf16.mxu0 0
    %884 = vmatpush1.bf16.msra.mxu0 0
    %885 = vmatprep.subr.bf16.mxu0 0
    %886 = vmatpush1.bf16.msra.mxu0 0
    %887 = vmatprep.subr.bf16.mxu0 0
    %888 = vmatpush1.bf16.msra.mxu0 0
    %889 = vmatprep.subr.bf16.mxu0 0
    %890 = vmatpush1.bf16.msra.mxu0 0
    %891 = vmatprep.subr.bf16.mxu0 0
    %892 = vmatpush1.bf16.msra.mxu0 0
    %893 = vmatprep.mubr.bf16.mxu0 0
    %894 = vmatmul.mubr.bf16.gmra.mrb[0].mxu0 %v796
    %v895 = vpop.f32.mrb[0].mxu0
    %v896 = vadd.f32 0.0, %v895
    %v897 = vpop.f32.mrb[0].mxu0
    %v898 = vpop.f32.mrb[0].mxu0
    %v899 = vadd.f32 0.0, %v898
    %v900 = vpop.f32.mrb[0].mxu0
    %901 = vdwg.mxu0
    %v902 = vadd.f32 %v691, %v896
    %v903 = vadd.f32 %v692, %v899
    %904 = vst.msk [vmem:[#allocation7] sm:$0xff] %vm63, %v902
    %905 = vst.msk [vmem:[#allocation7 + $0x8] sm:$0xff] %vm63, %v903
    // Predicated region
    $region34: #{tpu_custom_call.1} parent=1 // pred_check
      _
    $region35: #{tpu_custom_call.1} parent=1 // pred_check_branch
      %907 = sbr.rel (0) target = $region37
    $region36: #{tpu_custom_call.1} parent=1 // pred_region
      %s909 = ssub.s32 256, 256
      %910 = vsyncadd [#allocation4], %s909
      %s911 = sshll.u32 [#allocation7], 4
      %s912 = int_to_ptr.vmem [resolvable:$true] %s911
      %917 = dma.vmem_to_hbm [thread:$0]  %s912, 256, %s6, [#allocation4], 128, 128, 8
    $region37: #{tpu_custom_call.1} parent=1 // pred_fallthru
      _
    // Predicated region
    $region38: #{tpu_custom_call.1} parent=1 // pred_check
      _
    $region39: #{tpu_custom_call.1} parent=1 // pred_check_branch
      %919 = sbr.rel (0) target = $region41
    $region40: #{tpu_custom_call.1} parent=1 // pred_region
      %920 = dma.done [#allocation4], 256
    $region41: #{tpu_custom_call.1} parent=1 // pred_fallthru
      _
    %921 = vsyncpa [#allocation3], 1
    %922 = vsyncpa [#allocation6], 1
    %923 = vsyncpa [#allocation4], 1

</llo_original>
